<compile_context>
chip_gen: v6e
topology: v6e:2x2x1
jax: 0.10.0
libtpu: 0.0.40
codegen_flags: <defaults>
</compile_context>

<pallas_src>
import functools
import math

import jax
import jax.numpy as jnp
from jax.experimental import pallas as pl
from jax.experimental.pallas import tpu as pltpu


def _margin_terms(x_f32, tgt_i32, *, pos, neg, sqrt_lam):
    """Per-element margin loss. sqrt(lam) is folded into the negative branch so
    a single square after the select replaces (square, square, mul)."""
    b, c = x_f32.shape
    classes = jax.lax.broadcasted_iota(jnp.int32, (b, c), 1)
    pos_m = jnp.maximum(0.0, pos - x_f32)
    neg_m = jnp.maximum(0.0, x_f32 - neg) * sqrt_lam
    return jnp.square(jnp.where(classes == tgt_i32, pos_m, neg_m))


def _margin_loss_single_kernel(out_ref, tgt_ref, loss_ref, *,
                               pos, neg, sqrt_lam, inv_batch):
    x = out_ref[...].astype(jnp.float32)            # (B, C) — cast in-kernel
    loss = _margin_terms(x, tgt_ref[...], pos=pos, neg=neg, sqrt_lam=sqrt_lam)
    # scalar result straight to SMEM; 1/B folded as a trace-time constant
    loss_ref[0, 0] = jnp.sum(loss) * inv_batch


def _margin_loss_tile_kernel(out_ref, tgt_ref, partial_ref, *,
                             pos, neg, sqrt_lam):
    x = out_ref[...].astype(jnp.float32)            # (TB, C)
    loss = _margin_terms(x, tgt_ref[...], pos=pos, neg=neg, sqrt_lam=sqrt_lam)
    # per-tile partial, broadcast into a lane-dense (1, 8, 128) block
    partial_ref[...] = jnp.broadcast_to(jnp.sum(loss), partial_ref.shape)


def margin_loss(output, target, num_classes, pos=0.9, neg=0.1, lam=0.5,
                block_rows=1024):
    """output: [B, num_classes] float (any float dtype); target: [B] int class ids."""
    assert output.ndim == 2 and output.shape[1] == num_classes
    assert block_rows % 16 == 0   # bf16 sublane packing (also satisfies f32's 8)
    b, c = output.shape
    itemsize = int(jnp.dtype(output.dtype).itemsize)
    target2d = target.astype(jnp.int32).reshape(b, 1)
    sqrt_lam = math.sqrt(float(lam))

    if b <= block_rows:
        # --- small-batch path: one block, scalar SMEM output --------------------
        kernel = functools.partial(
            _margin_loss_single_kernel, pos=float(pos), neg=float(neg),
            sqrt_lam=sqrt_lam, inv_batch=1.0 / float(b))
        loss = pl.pallas_call(
            kernel,
            out_shape=jax.ShapeDtypeStruct((1, 1), jnp.float32),
            in_specs=[
                pl.BlockSpec((b, c), lambda: (0, 0)),       # logits, native dtype
                pl.BlockSpec((b, 1), lambda: (0, 0)),       # targets
            ],
            out_specs=pl.BlockSpec(memory_space=pltpu.SMEM),
            cost_estimate=pl.CostEstimate(
                flops=9 * b * c, transcendentals=0,
                bytes_accessed=b * c * itemsize + 4 * b + 4),
        )(output, target2d)
        return loss[0, 0]

    # --- large-batch path: batch-tiled grid, per-tile partials, parallel axis ---
    tb = block_rows
    num_tiles = pl.cdiv(b, tb)
    b_pad = num_tiles * tb
    if b_pad != b:
        # zero rows -> relu(0 - neg) = 0; target -1 never matches the class iota,
        # so padded rows contribute exactly 0 to the loss.
        output = jnp.pad(output, ((0, b_pad - b), (0, 0)))
        target2d = jnp.pad(target2d, ((0, b_pad - b), (0, 0)), constant_values=-1)

    kernel = functools.partial(
        _margin_loss_tile_kernel, pos=float(pos), neg=float(neg), sqrt_lam=sqrt_lam)
    partials = pl.pallas_call(
        kernel,
        grid=(num_tiles,),
        out_shape=jax.ShapeDtypeStruct((num_tiles, 8, 128), jnp.float32),
        in_specs=[
            pl.BlockSpec((tb, c), lambda i: (i, 0)),
            pl.BlockSpec((tb, 1), lambda i: (i, 0)),
        ],
        out_specs=pl.BlockSpec((1, 8, 128), lambda i: (i, 0, 0)),
        compiler_params=pltpu.CompilerParams(
            dimension_semantics=("parallel",)),      # shards tiles across TCs on v7x
        cost_estimate=pl.CostEstimate(
            flops=9 * b_pad * c, transcendentals=0,
            bytes_accessed=b_pad * c * itemsize + 4 * b_pad
                           + num_tiles * 8 * 128 * 4),
    )(output, target2d)
    # final reduction + divide-by-batch in the wrapper (keeps the grid axis parallel)
    return jnp.sum(partials[:, 0, 0]) / b


def margin_loss_ref(output, target, num_classes, pos=0.9, neg=0.1, lam=0.5):
    out_f32 = output.astype(jnp.float32)
    gt = jax.nn.one_hot(target, num_classes, dtype=jnp.float32)
    pos_part = jnp.square(jnp.maximum(0.0, pos - out_f32))
    neg_part = jnp.square(jnp.maximum(0.0, out_f32 - neg))
    loss = gt * pos_part + lam * (1.0 - gt) * neg_part
    return jnp.sum(loss) / output.shape[0]


if __name__ == "__main__":
    num_classes = 10
    key = jax.random.PRNGKey(0)
    k1, k2, k3, k4 = jax.random.split(key, 4)

    # --- small batch (single-block path), f32 ---------------------------------
    b_small = 8
    out_s = jax.random.uniform(k1, (b_small, num_classes), dtype=jnp.float32)
    tgt_s = jax.random.randint(k2, (b_small,), 0, num_classes, dtype=jnp.int32)
    loss_s = jax.block_until_ready(margin_loss(out_s, tgt_s, num_classes))
    ref_s = margin_loss_ref(out_s, tgt_s, num_classes)
    assert jnp.allclose(loss_s, ref_s, rtol=1e-5, atol=1e-5), (loss_s, ref_s)

    # --- small batch, bf16 (native-dtype load, in-kernel f32 cast) -------------
    out_sb = out_s.astype(jnp.bfloat16)
    loss_sb = jax.block_until_ready(margin_loss(out_sb, tgt_s, num_classes))
    ref_sb = margin_loss_ref(out_sb, tgt_s, num_classes)
    assert jnp.allclose(loss_sb, ref_sb, rtol=1e-2, atol=1e-2), (loss_sb, ref_sb)

    # --- larger batch (gridded parallel path, exercises remainder padding) -----
    b_large = 1500
    out_l = jax.random.uniform(k3, (b_large, num_classes), dtype=jnp.float32)
    tgt_l = jax.random.randint(k4, (b_large,), 0, num_classes, dtype=jnp.int32)
    loss_l = jax.block_until_ready(
        margin_loss(out_l, tgt_l, num_classes, block_rows=512))
    ref_l = margin_loss_ref(out_l, tgt_l, num_classes)
    assert jnp.allclose(loss_l, ref_l, rtol=1e-4, atol=1e-4), (loss_l, ref_l)

    print("KERNEL_OK")
</pallas_src>

<mosaic_0001>
module attributes {stable_mosaic.version = 11 : i64} {
  func.func @_margin_loss_single_kernel(%arg0: memref<8x10xf32, #tpu.memory_space<vmem>>, %arg1: memref<8x1xi32, #tpu.memory_space<vmem>>, %arg2: memref<1x1xf32, #tpu.memory_space<smem>>) attributes {dimension_semantics = [], scalar_prefetch = 0 : i64, scratch_operands = 0 : i64, tpu.core_type = #tpu.core_type<tc>} {
    %c0 = arith.constant 0 : index
    %c0_0 = arith.constant 0 : index
    %0 = vector.load %arg0[%c0, %c0_0] : memref<8x10xf32, #tpu.memory_space<vmem>>, vector<8x10xf32>
    %c0_1 = arith.constant 0 : index
    %c0_2 = arith.constant 0 : index
    %1 = vector.load %arg1[%c0_1, %c0_2] : memref<8x1xi32, #tpu.memory_space<vmem>>, vector<8x1xi32>
    %2 = tpu.iota {dimensions = array<i32: 1>} : vector<8x10xi32>
    %cst = arith.constant 0.899999976 : f32
    %3 = vector.broadcast %cst : f32 to vector<8x10xf32>
    %4 = arith.subf %3, %0 : vector<8x10xf32>
    %cst_3 = arith.constant 0.000000e+00 : f32
    %5 = vector.broadcast %cst_3 : f32 to vector<8x10xf32>
    %6 = arith.maximumf %5, %4 : vector<8x10xf32>
    %cst_4 = arith.constant 1.000000e-01 : f32
    %7 = vector.broadcast %cst_4 : f32 to vector<8x10xf32>
    %8 = arith.subf %0, %7 : vector<8x10xf32>
    %cst_5 = arith.constant 0.000000e+00 : f32
    %9 = vector.broadcast %cst_5 : f32 to vector<8x10xf32>
    %10 = arith.maximumf %9, %8 : vector<8x10xf32>
    %cst_6 = arith.constant 0.707106769 : f32
    %11 = vector.broadcast %cst_6 : f32 to vector<8x10xf32>
    %12 = arith.mulf %10, %11 : vector<8x10xf32>
    %13 = vector.broadcast %1 : vector<8x1xi32> to vector<8x10xi32>
    %14 = arith.cmpi eq, %2, %13 : vector<8x10xi32>
    %15 = arith.select %14, %6, %12 : vector<8x10xi1>, vector<8x10xf32>
    %16 = arith.mulf %15, %15 : vector<8x10xf32>
    %17 = vector.shape_cast %16 : vector<8x10xf32> to vector<1x8x10xf32>
    %cst_7 = arith.constant dense<0.000000e+00> : vector<1xf32>
    %18 = vector.multi_reduction <add>, %17, %cst_7 [1, 2] : vector<1x8x10xf32> to vector<1xf32>
    %19 = vector.shape_cast %18 : vector<1xf32> to vector<1x1x1xf32>
    %20 = vector.extract %19[0, 0, 0] : f32 from vector<1x1x1xf32>
    %cst_8 = arith.constant 1.250000e-01 : f32
    %21 = arith.mulf %20, %cst_8 : f32
    %c0_9 = arith.constant 0 : index
    %c0_10 = arith.constant 0 : index
    %22 = memref.load %arg2[%c0_9, %c0_10] : memref<1x1xf32, #tpu.memory_space<smem>>
    memref.store %21, %arg2[%c0_9, %c0_10] : memref<1x1xf32, #tpu.memory_space<smem>>
    return
  }
}

</mosaic_0001>

<llo_original>
// kernel: tpu_custom_call.1
$region0: #{tpu_custom_call.1}
  #allocation0 [shape = 'u32[]', space=smem, size = 0x4, offset = 0x4, fixed_abs, tag = 'smem constant byte address 0x4 - core index']
  #allocation1 [shape = 'u32[144,128]{1,0:T(1,128)}', space=vmem, size = 0x12000, scoped, tag = 'internal scratch']
  %s0 = inlined_call_operand.vmem [shape: f32[8,10], index: 0, kind: input, shape index: {}]
  %s1 = inlined_call_operand.vmem [shape: s32[8,1], index: 1, kind: input, shape index: {}]
  %s2 = inlined_call_operand.hbm [shape: f32[1,1], index: 2, kind: output, shape index: {}]
  %s3 = sld [smem:[#allocation0]]
  $region18: #{tpu_custom_call.1} parent=0
    _
  %s5 = ssub.s32 1, %s3
  %s6 = scalar_select 0, %s5, %s3
  $region1: #{tpu_custom_call.1} parent=0
    #allocation2 [shape = 'u8[512]{0}', space=smem, size = 0x200, scoped, tag = 'output window, operand 0, single buffered']
    #allocation3 [shape = 's32[1]{0}', space=sflag, size = 0x4, scoped, tag = 'scoped memory for tpu_custom_call.1']
    %7 = vsyncpa [#allocation3], 0
    // Predicated region
    $region2: #{tpu_custom_call.1} parent=1 // pred_check
      _
    $region3: #{tpu_custom_call.1} parent=1 // pred_check_branch
      %9 = sbr.rel (0) target = $region5
    $region4: #{tpu_custom_call.1} parent=1 // pred_region
      _
    $region5: #{tpu_custom_call.1} parent=1 // pred_fallthru
      _
    // Predicated region
    $region6: #{tpu_custom_call.1} parent=1 // pred_check
      _
    $region7: #{tpu_custom_call.1} parent=1 // pred_check_branch
      %11 = sbr.rel (0) target = $region9
    $region8: #{tpu_custom_call.1} parent=1 // pred_region
      _
    $region9: #{tpu_custom_call.1} parent=1 // pred_fallthru
      _
    %v12 = vld [vmem:[%s0] sm:$0xff]
    %v13 = vld [vmem:[%s1] sm:$0xff]
    %v14 = vlaneseq
    %v15 = vand.u32 %v14, 127
    %v16 = vsub.f32 0.9, %v12
    %v17 = vmax.f32 %v16, 0.0
    %v18 = vsub.f32 %v12, 0.1
    %v19 = vmax.f32 %v18, 0.0
    %v20 = vmul.f32 %v19, 0.70710677
    %21 = vset.pattern.permute.xlu0 0
    %22 = vperm.xlu0 %21, %v13
    %v23 = vpop.permute.xlu0 %22
    %vm24 = vcmp.eq.s32.totalorder %v15, %v23
    %v25 = vsel %vm24, %v17, %v20
    %v26 = vmul.f32 %v25, %v25
    %vm27 = vcmask 80896
    %v28 = vsel %vm27, %v26, 0.0
    %29 = vadd.xlane.f32.xlu0 %v28
    %v30 = vpop.xlane.xlu0 %29
    %v31 = vrot.slane %v30, 4
    %v32 = vadd.f32 %v30, %v31
    %v33 = vrot.slane %v32, 2
    %v34 = vadd.f32 %v32, %v33
    %v35 = vrot.slane %v34, 1
    %v36 = vadd.f32 %v34, %v35
    %s37 = vtos %v36
    %s38 = smul.f32 %s37, 0.125
    %s39 = scalar_lea.smem [#allocation2], 0
    %40 = sst [smem:[%s39]] %s38
    // Predicated region
    $region10: #{tpu_custom_call.1} parent=1 // pred_check
      _
    $region11: #{tpu_custom_call.1} parent=1 // pred_check_branch
      %42 = sbr.rel (0) target = $region13
    $region12: #{tpu_custom_call.1} parent=1 // pred_region
      %s44 = ssub.s32 16, 16
      %45 = vsyncadd [#allocation3], %s44
      %48 = dma.smem_to_hbm [#allocation2], 16, %s2, [#allocation3]
    $region13: #{tpu_custom_call.1} parent=1 // pred_fallthru
      _
    // Predicated region
    $region14: #{tpu_custom_call.1} parent=1 // pred_check
      _
    $region15: #{tpu_custom_call.1} parent=1 // pred_check_branch
      %50 = sbr.rel (0) target = $region17
    $region16: #{tpu_custom_call.1} parent=1 // pred_region
      %51 = dma.done [#allocation3], 16
    $region17: #{tpu_custom_call.1} parent=1 // pred_fallthru
      _
    %52 = sfence
    %53 = vsyncpa [#allocation3], 1

</llo_original>
